<compile_context>
chip_gen: v7x
topology: tpu7x:2x2x1
jax: 0.10.0
libtpu: 0.0.40
codegen_flags: <defaults>
</compile_context>

<pallas_src>
import math

import jax
import jax.numpy as jnp
from jax import lax
from jax.experimental import pallas as pl
from jax.experimental.pallas import tpu as pltpu


def _round_up(x, m):
    return ((x + m - 1) // m) * m


def _critic_kernel(x_ref, w1_ref, b1_ref, w2_ref, b2_ref, out_ref):
    # Layer 1 on the MXU, transposed so batch maps to lanes:
    #   hT = w1 @ x.T : (F, H) x (TB, H)^T -> (F, TB), f32 accumulation.
    hT = lax.dot_general(
        w1_ref[...], x_ref[...],
        dimension_numbers=(((1,), (1,)), ((), ())),
        preferred_element_type=jnp.float32,
    )
    # Bias (F, 1) broadcasts over lanes; tanh on the VPU/EUP in f32.
    hT = jnp.tanh(hT + b1_ref[...])
    # Layer 2 (Linear(512 -> 1)): VPU multiply + cross-sublane reduce (XLU).
    v = jnp.sum(hT * w2_ref[...], axis=0, keepdims=True)      # (1, TB)
    out_ref[...] = (v + b2_ref[0, 0]).astype(out_ref.dtype)   # lane-dense store


def _vmem_bytes(tb, H, F, in_itemsize):
    lane = lambda n: _round_up(n, 128)
    sub = lambda n: _round_up(n, 8)
    b = 2 * sub(tb) * lane(H) * in_itemsize       # x, double-buffered
    b += 2 * sub(F) * lane(H) * in_itemsize       # w1 (resident; allow 2 bufs)
    b += 2 * 2 * sub(F) * lane(1) * 4             # b1, w2
    b += 2 * sub(1) * lane(tb) * 4                # out, double-buffered
    b += sub(F) * lane(tb) * 4                    # hT temporary
    return b


def meta_agent_critic(hidden_state, params, *, block_b=512, use_bf16=False):
    """Pallas equivalent of Meta_agent_critic.forward.

    hidden_state: (batch, hidden) f32 array, or a tuple whose first element is
                  such an array (mirrors the PyTorch branch).
    params: w1 (512, hidden) [PyTorch (out, in) layout], b1 (512, 1),
            w2 (512, 1) [column; transpose of PyTorch (1, 512)], b2 (1, 1).
    returns: (batch, 1) f32 value.
    """
    if isinstance(hidden_state, tuple):
        hidden_state = hidden_state[0]

    x = hidden_state
    B, H = x.shape
    w1, b1, w2, b2 = params["w1"], params["b1"], params["w2"], params["b2"]
    F = w1.shape[0]  # 512

    # Batch tile: multiple of 128 (lane-dense output), capped by block_b.
    tb = min(_round_up(block_b, 128), _round_up(B, 128))
    B_pad = _round_up(B, tb)
    if B_pad != B:
        x = jnp.pad(x, ((0, B_pad - B), (0, 0)))

    if use_bf16:
        # MXU feed in bf16; accumulation / bias / tanh stay f32 in the kernel.
        x = x.astype(jnp.bfloat16)
        w1 = w1.astype(jnp.bfloat16)

    in_itemsize = jnp.dtype(x.dtype).itemsize
    # Keep headroom but stay within v7x's 64 MiB physical VMEM per core.
    vmem_limit = min(64 << 20, max(32 << 20, 2 * _vmem_bytes(tb, H, F, in_itemsize)))

    cost = pl.CostEstimate(
        flops=2 * B_pad * H * F + 2 * B_pad * F,
        transcendentals=B_pad * F,
        bytes_accessed=(B_pad * H + F * H) * in_itemsize + 4 * (2 * F + 1 + B_pad),
    )

    out = pl.pallas_call(
        _critic_kernel,
        out_shape=jax.ShapeDtypeStruct((1, B_pad), jnp.float32),
        grid=(B_pad // tb,),
        in_specs=[
            pl.BlockSpec((tb, H), lambda i: (i, 0)),            # x tile, pipelined
            pl.BlockSpec((F, H), lambda i: (0, 0)),             # w1 resident
            pl.BlockSpec((F, 1), lambda i: (0, 0)),             # b1 resident
            pl.BlockSpec((F, 1), lambda i: (0, 0)),             # w2 resident
            pl.BlockSpec(memory_space=pltpu.MemorySpace.SMEM),  # b2 scalar
        ],
        out_specs=pl.BlockSpec((1, tb), lambda i: (0, i)),      # lane-dense output
        compiler_params=pltpu.CompilerParams(
            dimension_semantics=("parallel",),                  # megacore on v7x
            vmem_limit_bytes=int(vmem_limit),
        ),
        cost_estimate=cost,
    )(x, w1, b1, w2, b2)

    return out[0, :B].reshape(B, 1)


def init_params(key, hidden_size, features=512):
    """Params matching layer_init: orthogonal weights, zero bias.

    w1 kept in PyTorch (out, in) layout; w2 stored as a (512, 1) column
    (transpose of PyTorch's (1, 512)) so it broadcasts over lanes.
    """
    k1, k2 = jax.random.split(key)
    w1 = jax.nn.initializers.orthogonal(scale=math.sqrt(2.0))(
        k1, (features, hidden_size), jnp.float32)
    b1 = jnp.zeros((features, 1), jnp.float32)
    w2 = jax.nn.initializers.orthogonal(scale=1.0)(k2, (features, 1), jnp.float32)
    b2 = jnp.zeros((1, 1), jnp.float32)
    return {"w1": w1, "b1": b1, "w2": w2, "b2": b2}


if __name__ == "__main__":
    key = jax.random.PRNGKey(0)
    batch, hidden_size = 8, 32

    pkey, xkey = jax.random.split(key)
    params = init_params(pkey, hidden_size)
    hidden_state = jax.random.normal(xkey, (batch, hidden_size), jnp.float32)

    # Also exercise the tuple branch of forward().
    value = meta_agent_critic((hidden_state, None), params)
    value = jax.block_until_ready(value)

    # Reference check in plain JAX (PyTorch semantics: x @ W1.T + b1, tanh, @ W2.T + b2).
    ref = (jnp.tanh(hidden_state @ params["w1"].T + params["b1"].T)
           @ params["w2"] + params["b2"])
    assert value.shape == (batch, 1)
    assert jnp.allclose(value, ref, atol=1e-5), "mismatch vs reference"

    print("KERNEL_OK")
</pallas_src>

<mosaic_0001>
module attributes {stable_mosaic.version = 11 : i64} {
  func.func @_critic_kernel(%arg0: i32, %arg1: memref<128x32xf32, #tpu.memory_space<vmem>>, %arg2: memref<512x32xf32, #tpu.memory_space<vmem>>, %arg3: memref<512x1xf32, #tpu.memory_space<vmem>>, %arg4: memref<512x1xf32, #tpu.memory_space<vmem>>, %arg5: memref<1x1xf32, #tpu.memory_space<smem>>, %arg6: memref<1x128xf32, #tpu.memory_space<vmem>>) attributes {dimension_semantics = [#tpu.dimension_semantics<parallel>], iteration_bounds = array<i64: 1>, scalar_prefetch = 0 : i64, scratch_operands = 0 : i64, tpu.core_type = #tpu.core_type<tc>, window_params = [{transform_indices = @transform_0, window_bounds = array<i64: 128, 32>}, {pipeline_mode = #tpu.pipeline_mode<synchronous>, transform_indices = @transform_1, window_bounds = array<i64: 512, 32>}, {pipeline_mode = #tpu.pipeline_mode<synchronous>, transform_indices = @transform_2, window_bounds = array<i64: 512, 1>}, {pipeline_mode = #tpu.pipeline_mode<synchronous>, transform_indices = @transform_3, window_bounds = array<i64: 512, 1>}, {transform_indices = @transform_4, window_bounds = array<i64: 1, 1>}, {transform_indices = @transform_5, window_bounds = array<i64: 1, 128>}]} {
    %c0 = arith.constant 0 : index
    %c0_0 = arith.constant 0 : index
    %0 = vector.load %arg2[%c0, %c0_0] : memref<512x32xf32, #tpu.memory_space<vmem>>, vector<512x32xf32>
    %c0_1 = arith.constant 0 : index
    %c0_2 = arith.constant 0 : index
    %1 = vector.load %arg1[%c0_1, %c0_2] : memref<128x32xf32, #tpu.memory_space<vmem>>, vector<128x32xf32>
    %cst = arith.constant dense<0.000000e+00> : vector<512x128xf32>
    %2 = tpu.matmul %0, %1, %cst {dimension_numbers = #tpu.dot_dimension_numbers<[1], [1], [0], [0], [0, 0, 1, 0], [], []>} : vector<512x32xf32>, vector<128x32xf32>, vector<512x128xf32> -> vector<512x128xf32>
    %c0_3 = arith.constant 0 : index
    %c0_4 = arith.constant 0 : index
    %3 = vector.load %arg3[%c0_3, %c0_4] : memref<512x1xf32, #tpu.memory_space<vmem>>, vector<512x1xf32>
    %4 = vector.broadcast %3 : vector<512x1xf32> to vector<512x128xf32>
    %5 = arith.addf %2, %4 : vector<512x128xf32>
    %6 = math.tanh %5 : vector<512x128xf32>
    %c0_5 = arith.constant 0 : index
    %c0_6 = arith.constant 0 : index
    %7 = vector.load %arg4[%c0_5, %c0_6] : memref<512x1xf32, #tpu.memory_space<vmem>>, vector<512x1xf32>
    %8 = vector.broadcast %7 : vector<512x1xf32> to vector<512x128xf32>
    %9 = arith.mulf %6, %8 : vector<512x128xf32>
    %cst_7 = arith.constant dense<0.000000e+00> : vector<128xf32>
    %10 = vector.multi_reduction <add>, %9, %cst_7 [0] : vector<512x128xf32> to vector<128xf32>
    %11 = vector.shape_cast %10 : vector<128xf32> to vector<1x128xf32>
    %c0_8 = arith.constant 0 : index
    %c0_9 = arith.constant 0 : index
    %12 = memref.load %arg5[%c0_8, %c0_9] : memref<1x1xf32, #tpu.memory_space<smem>>
    %13 = vector.broadcast %12 : f32 to vector<1x128xf32>
    %14 = arith.addf %11, %13 : vector<1x128xf32>
    %c0_10 = arith.constant 0 : index
    %c0_11 = arith.constant 0 : index
    %15 = vector.load %arg6[%c0_10, %c0_11] : memref<1x128xf32, #tpu.memory_space<vmem>>, vector<1x128xf32>
    tpu.vector_store %arg6[%c0_10, %c0_11], %14 {strides = array<i32>} : memref<1x128xf32, #tpu.memory_space<vmem>>, vector<1x128xf32>,
    return
  }
  func.func @transform_0(%arg0: i32) -> (i32, i32) {
    %c0_i32 = arith.constant 0 : i32
    %c0_i32_0 = arith.constant 0 : i32
    return %arg0, %c0_i32 : i32, i32
  }
  func.func @transform_1(%arg0: i32) -> (i32, i32) {
    %c0_i32 = arith.constant 0 : i32
    %c0_i32_0 = arith.constant 0 : i32
    %c0_i32_1 = arith.constant 0 : i32
    return %c0_i32, %c0_i32_0 : i32, i32
  }
  func.func @transform_2(%arg0: i32) -> (i32, i32) {
    %c0_i32 = arith.constant 0 : i32
    %c0_i32_0 = arith.constant 0 : i32
    %c0_i32_1 = arith.constant 0 : i32
    return %c0_i32, %c0_i32_0 : i32, i32
  }
  func.func @transform_3(%arg0: i32) -> (i32, i32) {
    %c0_i32 = arith.constant 0 : i32
    %c0_i32_0 = arith.constant 0 : i32
    %c0_i32_1 = arith.constant 0 : i32
    return %c0_i32, %c0_i32_0 : i32, i32
  }
  func.func @transform_4(%arg0: i32) -> (i32, i32) {
    %c0_i32 = arith.constant 0 : i32
    %c0_i32_0 = arith.constant 0 : i32
    %c0_i32_1 = arith.constant 0 : i32
    return %c0_i32, %c0_i32_0 : i32, i32
  }
  func.func @transform_5(%arg0: i32) -> (i32, i32) {
    %c0_i32 = arith.constant 0 : i32
    %c0_i32_0 = arith.constant 0 : i32
    return %c0_i32, %arg0 : i32, i32
  }
}

</mosaic_0001>

<llo_original>
// kernel: tpu_custom_call.1
$region0: #{tpu_custom_call.1}
  #allocation0 [shape = 'u32[]', space=smem, size = 0x4, offset = 0x4, fixed_abs, tag = 'smem constant byte address 0x4 - core index']
  #allocation1 [shape = 'u32[144,128]{1,0:T(1,128)}', space=vmem, size = 0x12000, scoped, tag = 'internal scratch']
  #allocation2 [shape = 'f32[1,1]{1,0:T(1,128)S(6)}', space=smem, size = 0x200, scoped, tag = 'scoped memory for tpu_custom_call.1']
  %s0 = inlined_call_operand.vmem [shape: f32[128,32], index: 0, kind: input, shape index: {}]
  %s1 = inlined_call_operand.vmem [shape: f32[512,32], index: 1, kind: input, shape index: {}]
  %s2 = inlined_call_operand.vmem [shape: f32[512,1], index: 2, kind: input, shape index: {}]
  %s3 = inlined_call_operand.vmem [shape: f32[512,1], index: 3, kind: input, shape index: {}]
  %s4 = inlined_call_operand.<no memory space> [shape: f32[1,1], index: 4, kind: input, shape index: {}]
  %s5 = inlined_call_operand.hbm [shape: f32[1,128], index: 5, kind: output, shape index: {}]
  %s6 = sld [smem:[#allocation0]]
  $region30: #{tpu_custom_call.1} parent=0
    _
  %s8 = ssub.s32 1, %s6
  %s9 = scalar_select 0, %s8, %s6
  %10 = sst [smem:[#allocation2]] %s4
  $region1: #{tpu_custom_call.1} parent=0
    #allocation3 [shape = 'u8[512]{0}', space=vmem, size = 0x400, scoped, tag = 'output window, operand 0, single buffered']
    #allocation4 [shape = 's32[1]{0}', space=sflag, size = 0x4, scoped, tag = 'scoped memory for tpu_custom_call.1']
    %11 = vsyncpa [#allocation4], 0
    // Predicated region
    $region2: #{tpu_custom_call.1} parent=1 // pred_check
      _
    $region3: #{tpu_custom_call.1} parent=1 // pred_check_branch
      %13 = sbr.rel (0) target = $region5
    $region4: #{tpu_custom_call.1} parent=1 // pred_region
      _
    $region5: #{tpu_custom_call.1} parent=1 // pred_fallthru
      _
    // Predicated region
    $region6: #{tpu_custom_call.1} parent=1 // pred_check
      _
    $region7: #{tpu_custom_call.1} parent=1 // pred_check_branch
      %15 = sbr.rel (0) target = $region9
    $region8: #{tpu_custom_call.1} parent=1 // pred_region
      _
    $region9: #{tpu_custom_call.1} parent=1 // pred_fallthru
      _
    // Predicated region
    $region10: #{tpu_custom_call.1} parent=1 // pred_check
      _
    $region11: #{tpu_custom_call.1} parent=1 // pred_check_branch
      %17 = sbr.rel (0) target = $region13
    $region12: #{tpu_custom_call.1} parent=1 // pred_region
      _
    $region13: #{tpu_custom_call.1} parent=1 // pred_fallthru
      _
    // Predicated region
    $region14: #{tpu_custom_call.1} parent=1 // pred_check
      _
    $region15: #{tpu_custom_call.1} parent=1 // pred_check_branch
      %19 = sbr.rel (0) target = $region17
    $region16: #{tpu_custom_call.1} parent=1 // pred_region
      _
    $region17: #{tpu_custom_call.1} parent=1 // pred_fallthru
      _
    // Predicated region
    $region18: #{tpu_custom_call.1} parent=1 // pred_check
      _
    $region19: #{tpu_custom_call.1} parent=1 // pred_check_branch
      %21 = sbr.rel (0) target = $region21
    $region20: #{tpu_custom_call.1} parent=1 // pred_region
      _
    $region21: #{tpu_custom_call.1} parent=1 // pred_fallthru
      _
    %v22 = vld [vmem:[%s1] sm:$0xff]
    %v23 = vld [vmem:[%s1 + $0x8] sm:$0xff]
    %v24 = vld [vmem:[%s1 + $0x10] sm:$0xff]
    %v25 = vld [vmem:[%s1 + $0x18] sm:$0xff]
    %v26 = vld [vmem:[%s1 + $0x20] sm:$0xff]
    %v27 = vld [vmem:[%s1 + $0x28] sm:$0xff]
    %v28 = vld [vmem:[%s1 + $0x30] sm:$0xff]
    %v29 = vld [vmem:[%s1 + $0x38] sm:$0xff]
    %v30 = vld [vmem:[%s1 + $0x40] sm:$0xff]
    %v31 = vld [vmem:[%s1 + $0x48] sm:$0xff]
    %v32 = vld [vmem:[%s1 + $0x50] sm:$0xff]
    %v33 = vld [vmem:[%s1 + $0x58] sm:$0xff]
    %v34 = vld [vmem:[%s1 + $0x60] sm:$0xff]
    %v35 = vld [vmem:[%s1 + $0x68] sm:$0xff]
    %v36 = vld [vmem:[%s1 + $0x70] sm:$0xff]
    %v37 = vld [vmem:[%s1 + $0x78] sm:$0xff]
    %v38 = vld [vmem:[%s1 + $0x80] sm:$0xff]
    %v39 = vld [vmem:[%s1 + $0x88] sm:$0xff]
    %v40 = vld [vmem:[%s1 + $0x90] sm:$0xff]
    %v41 = vld [vmem:[%s1 + $0x98] sm:$0xff]
    %v42 = vld [vmem:[%s1 + $0xa0] sm:$0xff]
    %v43 = vld [vmem:[%s1 + $0xa8] sm:$0xff]
    %v44 = vld [vmem:[%s1 + $0xb0] sm:$0xff]
    %v45 = vld [vmem:[%s1 + $0xb8] sm:$0xff]
    %v46 = vld [vmem:[%s1 + $0xc0] sm:$0xff]
    %v47 = vld [vmem:[%s1 + $0xc8] sm:$0xff]
    %v48 = vld [vmem:[%s1 + $0xd0] sm:$0xff]
    %v49 = vld [vmem:[%s1 + $0xd8] sm:$0xff]
    %v50 = vld [vmem:[%s1 + $0xe0] sm:$0xff]
    %v51 = vld [vmem:[%s1 + $0xe8] sm:$0xff]
    %v52 = vld [vmem:[%s1 + $0xf0] sm:$0xff]
    %v53 = vld [vmem:[%s1 + $0xf8] sm:$0xff]
    %v54 = vld [vmem:[%s1 + $0x100] sm:$0xff]
    %v55 = vld [vmem:[%s1 + $0x108] sm:$0xff]
    %v56 = vld [vmem:[%s1 + $0x110] sm:$0xff]
    %v57 = vld [vmem:[%s1 + $0x118] sm:$0xff]
    %v58 = vld [vmem:[%s1 + $0x120] sm:$0xff]
    %v59 = vld [vmem:[%s1 + $0x128] sm:$0xff]
    %v60 = vld [vmem:[%s1 + $0x130] sm:$0xff]
    %v61 = vld [vmem:[%s1 + $0x138] sm:$0xff]
    %v62 = vld [vmem:[%s1 + $0x140] sm:$0xff]
    %v63 = vld [vmem:[%s1 + $0x148] sm:$0xff]
    %v64 = vld [vmem:[%s1 + $0x150] sm:$0xff]
    %v65 = vld [vmem:[%s1 + $0x158] sm:$0xff]
    %v66 = vld [vmem:[%s1 + $0x160] sm:$0xff]
    %v67 = vld [vmem:[%s1 + $0x168] sm:$0xff]
    %v68 = vld [vmem:[%s1 + $0x170] sm:$0xff]
    %v69 = vld [vmem:[%s1 + $0x178] sm:$0xff]
    %v70 = vld [vmem:[%s1 + $0x180] sm:$0xff]
    %v71 = vld [vmem:[%s1 + $0x188] sm:$0xff]
    %v72 = vld [vmem:[%s1 + $0x190] sm:$0xff]
    %v73 = vld [vmem:[%s1 + $0x198] sm:$0xff]
    %v74 = vld [vmem:[%s1 + $0x1a0] sm:$0xff]
    %v75 = vld [vmem:[%s1 + $0x1a8] sm:$0xff]
    %v76 = vld [vmem:[%s1 + $0x1b0] sm:$0xff]
    %v77 = vld [vmem:[%s1 + $0x1b8] sm:$0xff]
    %v78 = vld [vmem:[%s1 + $0x1c0] sm:$0xff]
    %v79 = vld [vmem:[%s1 + $0x1c8] sm:$0xff]
    %v80 = vld [vmem:[%s1 + $0x1d0] sm:$0xff]
    %v81 = vld [vmem:[%s1 + $0x1d8] sm:$0xff]
    %v82 = vld [vmem:[%s1 + $0x1e0] sm:$0xff]
    %v83 = vld [vmem:[%s1 + $0x1e8] sm:$0xff]
    %v84 = vld [vmem:[%s1 + $0x1f0] sm:$0xff]
    %v85 = vld [vmem:[%s1 + $0x1f8] sm:$0xff]
    %v86 = vld [vmem:[%s0] sm:$0xff]
    %v87 = vld [vmem:[%s0 + $0x8] sm:$0xff]
    %v88 = vld [vmem:[%s0 + $0x10] sm:$0xff]
    %v89 = vld [vmem:[%s0 + $0x18] sm:$0xff]
    %v90 = vld [vmem:[%s0 + $0x20] sm:$0xff]
    %v91 = vld [vmem:[%s0 + $0x28] sm:$0xff]
    %v92 = vld [vmem:[%s0 + $0x30] sm:$0xff]
    %v93 = vld [vmem:[%s0 + $0x38] sm:$0xff]
    %v94 = vld [vmem:[%s0 + $0x40] sm:$0xff]
    %v95 = vld [vmem:[%s0 + $0x48] sm:$0xff]
    %v96 = vld [vmem:[%s0 + $0x50] sm:$0xff]
    %v97 = vld [vmem:[%s0 + $0x58] sm:$0xff]
    %v98 = vld [vmem:[%s0 + $0x60] sm:$0xff]
    %v99 = vld [vmem:[%s0 + $0x68] sm:$0xff]
    %v100 = vld [vmem:[%s0 + $0x70] sm:$0xff]
    %v101 = vld [vmem:[%s0 + $0x78] sm:$0xff]
    %v102 = vld [vmem:[%s2] sm:$0xff]
    %v103 = vld [vmem:[%s2 + $0x8] sm:$0xff]
    %v104 = vld [vmem:[%s2 + $0x10] sm:$0xff]
    %v105 = vld [vmem:[%s2 + $0x18] sm:$0xff]
    %v106 = vld [vmem:[%s2 + $0x20] sm:$0xff]
    %v107 = vld [vmem:[%s2 + $0x28] sm:$0xff]
    %v108 = vld [vmem:[%s2 + $0x30] sm:$0xff]
    %v109 = vld [vmem:[%s2 + $0x38] sm:$0xff]
    %v110 = vld [vmem:[%s2 + $0x40] sm:$0xff]
    %v111 = vld [vmem:[%s2 + $0x48] sm:$0xff]
    %v112 = vld [vmem:[%s2 + $0x50] sm:$0xff]
    %v113 = vld [vmem:[%s2 + $0x58] sm:$0xff]
    %v114 = vld [vmem:[%s2 + $0x60] sm:$0xff]
    %v115 = vld [vmem:[%s2 + $0x68] sm:$0xff]
    %v116 = vld [vmem:[%s2 + $0x70] sm:$0xff]
    %v117 = vld [vmem:[%s2 + $0x78] sm:$0xff]
    %v118 = vld [vmem:[%s2 + $0x80] sm:$0xff]
    %v119 = vld [vmem:[%s2 + $0x88] sm:$0xff]
    %v120 = vld [vmem:[%s2 + $0x90] sm:$0xff]
    %v121 = vld [vmem:[%s2 + $0x98] sm:$0xff]
    %v122 = vld [vmem:[%s2 + $0xa0] sm:$0xff]
    %v123 = vld [vmem:[%s2 + $0xa8] sm:$0xff]
    %v124 = vld [vmem:[%s2 + $0xb0] sm:$0xff]
    %v125 = vld [vmem:[%s2 + $0xb8] sm:$0xff]
    %v126 = vld [vmem:[%s2 + $0xc0] sm:$0xff]
    %v127 = vld [vmem:[%s2 + $0xc8] sm:$0xff]
    %v128 = vld [vmem:[%s2 + $0xd0] sm:$0xff]
    %v129 = vld [vmem:[%s2 + $0xd8] sm:$0xff]
    %v130 = vld [vmem:[%s2 + $0xe0] sm:$0xff]
    %v131 = vld [vmem:[%s2 + $0xe8] sm:$0xff]
    %v132 = vld [vmem:[%s2 + $0xf0] sm:$0xff]
    %v133 = vld [vmem:[%s2 + $0xf8] sm:$0xff]
    %v134 = vld [vmem:[%s2 + $0x100] sm:$0xff]
    %v135 = vld [vmem:[%s2 + $0x108] sm:$0xff]
    %v136 = vld [vmem:[%s2 + $0x110] sm:$0xff]
    %v137 = vld [vmem:[%s2 + $0x118] sm:$0xff]
    %v138 = vld [vmem:[%s2 + $0x120] sm:$0xff]
    %v139 = vld [vmem:[%s2 + $0x128] sm:$0xff]
    %v140 = vld [vmem:[%s2 + $0x130] sm:$0xff]
    %v141 = vld [vmem:[%s2 + $0x138] sm:$0xff]
    %v142 = vld [vmem:[%s2 + $0x140] sm:$0xff]
    %v143 = vld [vmem:[%s2 + $0x148] sm:$0xff]
    %v144 = vld [vmem:[%s2 + $0x150] sm:$0xff]
    %v145 = vld [vmem:[%s2 + $0x158] sm:$0xff]
    %v146 = vld [vmem:[%s2 + $0x160] sm:$0xff]
    %v147 = vld [vmem:[%s2 + $0x168] sm:$0xff]
    %v148 = vld [vmem:[%s2 + $0x170] sm:$0xff]
    %v149 = vld [vmem:[%s2 + $0x178] sm:$0xff]
    %v150 = vld [vmem:[%s2 + $0x180] sm:$0xff]
    %v151 = vld [vmem:[%s2 + $0x188] sm:$0xff]
    %v152 = vld [vmem:[%s2 + $0x190] sm:$0xff]
    %v153 = vld [vmem:[%s2 + $0x198] sm:$0xff]
    %v154 = vld [vmem:[%s2 + $0x1a0] sm:$0xff]
    %v155 = vld [vmem:[%s2 + $0x1a8] sm:$0xff]
    %v156 = vld [vmem:[%s2 + $0x1b0] sm:$0xff]
    %v157 = vld [vmem:[%s2 + $0x1b8] sm:$0xff]
    %v158 = vld [vmem:[%s2 + $0x1c0] sm:$0xff]
    %v159 = vld [vmem:[%s2 + $0x1c8] sm:$0xff]
    %v160 = vld [vmem:[%s2 + $0x1d0] sm:$0xff]
    %v161 = vld [vmem:[%s2 + $0x1d8] sm:$0xff]
    %v162 = vld [vmem:[%s2 + $0x1e0] sm:$0xff]
    %v163 = vld [vmem:[%s2 + $0x1e8] sm:$0xff]
    %v164 = vld [vmem:[%s2 + $0x1f0] sm:$0xff]
    %v165 = vld [vmem:[%s2 + $0x1f8] sm:$0xff]
    %167 = vset.pattern.permute.xlu0 0
    %168 = vperm.xlu0 %167, %v102
    %v169 = vpop.permute.xlu0 %168
    %172 = vset.pattern.permute.xlu0 0
    %173 = vperm.xlu0 %172, %v103
    %v174 = vpop.permute.xlu0 %173
    %177 = vset.pattern.permute.xlu0 0
    %178 = vperm.xlu0 %177, %v104
    %v179 = vpop.permute.xlu0 %178
    %182 = vset.pattern.permute.xlu0 0
    %183 = vperm.xlu0 %182, %v105
    %v184 = vpop.permute.xlu0 %183
    %187 = vset.pattern.permute.xlu0 0
    %188 = vperm.xlu0 %187, %v106
    %v189 = vpop.permute.xlu0 %188
    %192 = vset.pattern.permute.xlu0 0
    %193 = vperm.xlu0 %192, %v107
    %v194 = vpop.permute.xlu0 %193
    %197 = vset.pattern.permute.xlu0 0
    %198 = vperm.xlu0 %197, %v108
    %v199 = vpop.permute.xlu0 %198
    %202 = vset.pattern.permute.xlu0 0
    %203 = vperm.xlu0 %202, %v109
    %v204 = vpop.permute.xlu0 %203
    %207 = vset.pattern.permute.xlu0 0
    %208 = vperm.xlu0 %207, %v110
    %v209 = vpop.permute.xlu0 %208
    %212 = vset.pattern.permute.xlu0 0
    %213 = vperm.xlu0 %212, %v111
    %v214 = vpop.permute.xlu0 %213
    %217 = vset.pattern.permute.xlu0 0
    %218 = vperm.xlu0 %217, %v112
    %v219 = vpop.permute.xlu0 %218
    %222 = vset.pattern.permute.xlu0 0
    %223 = vperm.xlu0 %222, %v113
    %v224 = vpop.permute.xlu0 %223
    %227 = vset.pattern.permute.xlu0 0
    %228 = vperm.xlu0 %227, %v114
    %v229 = vpop.permute.xlu0 %228
    %232 = vset.pattern.permute.xlu0 0
    %233 = vperm.xlu0 %232, %v115
    %v234 = vpop.permute.xlu0 %233
    %237 = vset.pattern.permute.xlu0 0
    %238 = vperm.xlu0 %237, %v116
    %v239 = vpop.permute.xlu0 %238
    %242 = vset.pattern.permute.xlu0 0
    %243 = vperm.xlu0 %242, %v117
    %v244 = vpop.permute.xlu0 %243
    %247 = vset.pattern.permute.xlu0 0
    %248 = vperm.xlu0 %247, %v118
    %v249 = vpop.permute.xlu0 %248
    %252 = vset.pattern.permute.xlu0 0
    %253 = vperm.xlu0 %252, %v119
    %v254 = vpop.permute.xlu0 %253
    %257 = vset.pattern.permute.xlu0 0
    %258 = vperm.xlu0 %257, %v120
    %v259 = vpop.permute.xlu0 %258
    %262 = vset.pattern.permute.xlu0 0
    %263 = vperm.xlu0 %262, %v121
    %v264 = vpop.permute.xlu0 %263
    %267 = vset.pattern.permute.xlu0 0
    %268 = vperm.xlu0 %267, %v122
    %v269 = vpop.permute.xlu0 %268
    %272 = vset.pattern.permute.xlu0 0
    %273 = vperm.xlu0 %272, %v123
    %v274 = vpop.permute.xlu0 %273
    %277 = vset.pattern.permute.xlu0 0
    %278 = vperm.xlu0 %277, %v124
    %v279 = vpop.permute.xlu0 %278
    %282 = vset.pattern.permute.xlu0 0
    %283 = vperm.xlu0 %282, %v125
    %v284 = vpop.permute.xlu0 %283
    %287 = vset.pattern.permute.xlu0 0
    %288 = vperm.xlu0 %287, %v126
    %v289 = vpop.permute.xlu0 %288
    %292 = vset.pattern.permute.xlu0 0
    %293 = vperm.xlu0 %292, %v127
    %v294 = vpop.permute.xlu0 %293
    %297 = vset.pattern.permute.xlu0 0
    %298 = vperm.xlu0 %297, %v128
    %v299 = vpop.permute.xlu0 %298
    %302 = vset.pattern.permute.xlu0 0
    %303 = vperm.xlu0 %302, %v129
    %v304 = vpop.permute.xlu0 %303
    %307 = vset.pattern.permute.xlu0 0
    %308 = vperm.xlu0 %307, %v130
    %v309 = vpop.permute.xlu0 %308
    %312 = vset.pattern.permute.xlu0 0
    %313 = vperm.xlu0 %312, %v131
    %v314 = vpop.permute.xlu0 %313
    %317 = vset.pattern.permute.xlu0 0
    %318 = vperm.xlu0 %317, %v132
    %v319 = vpop.permute.xlu0 %318
    %322 = vset.pattern.permute.xlu0 0
    %323 = vperm.xlu0 %322, %v133
    %v324 = vpop.permute.xlu0 %323
    %327 = vset.pattern.permute.xlu0 0
    %328 = vperm.xlu0 %327, %v134
    %v329 = vpop.permute.xlu0 %328
    %332 = vset.pattern.permute.xlu0 0
    %333 = vperm.xlu0 %332, %v135
    %v334 = vpop.permute.xlu0 %333
    %337 = vset.pattern.permute.xlu0 0
    %338 = vperm.xlu0 %337, %v136
    %v339 = vpop.permute.xlu0 %338
    %342 = vset.pattern.permute.xlu0 0
    %343 = vperm.xlu0 %342, %v137
    %v344 = vpop.permute.xlu0 %343
    %347 = vset.pattern.permute.xlu0 0
    %348 = vperm.xlu0 %347, %v138
    %v349 = vpop.permute.xlu0 %348
    %352 = vset.pattern.permute.xlu0 0
    %353 = vperm.xlu0 %352, %v139
    %v354 = vpop.permute.xlu0 %353
    %357 = vset.pattern.permute.xlu0 0
    %358 = vperm.xlu0 %357, %v140
    %v359 = vpop.permute.xlu0 %358
    %362 = vset.pattern.permute.xlu0 0
    %363 = vperm.xlu0 %362, %v141
    %v364 = vpop.permute.xlu0 %363
    %367 = vset.pattern.permute.xlu0 0
    %368 = vperm.xlu0 %367, %v142
    %v369 = vpop.permute.xlu0 %368
    %372 = vset.pattern.permute.xlu0 0
    %373 = vperm.xlu0 %372, %v143
    %v374 = vpop.permute.xlu0 %373
    %377 = vset.pattern.permute.xlu0 0
    %378 = vperm.xlu0 %377, %v144
    %v379 = vpop.permute.xlu0 %378
    %382 = vset.pattern.permute.xlu0 0
    %383 = vperm.xlu0 %382, %v145
    %v384 = vpop.permute.xlu0 %383
    %387 = vset.pattern.permute.xlu0 0
    %388 = vperm.xlu0 %387, %v146
    %v389 = vpop.permute.xlu0 %388
    %392 = vset.pattern.permute.xlu0 0
    %393 = vperm.xlu0 %392, %v147
    %v394 = vpop.permute.xlu0 %393
    %397 = vset.pattern.permute.xlu0 0
    %398 = vperm.xlu0 %397, %v148
    %v399 = vpop.permute.xlu0 %398
    %402 = vset.pattern.permute.xlu0 0
    %403 = vperm.xlu0 %402, %v149
    %v404 = vpop.permute.xlu0 %403
    %407 = vset.pattern.permute.xlu0 0
    %408 = vperm.xlu0 %407, %v150
    %v409 = vpop.permute.xlu0 %408
    %412 = vset.pattern.permute.xlu0 0
    %413 = vperm.xlu0 %412, %v151
    %v414 = vpop.permute.xlu0 %413
    %417 = vset.pattern.permute.xlu0 0
    %418 = vperm.xlu0 %417, %v152
    %v419 = vpop.permute.xlu0 %418
    %422 = vset.pattern.permute.xlu0 0
    %423 = vperm.xlu0 %422, %v153
    %v424 = vpop.permute.xlu0 %423
    %427 = vset.pattern.permute.xlu0 0
    %428 = vperm.xlu0 %427, %v154
    %v429 = vpop.permute.xlu0 %428
    %432 = vset.pattern.permute.xlu0 0
    %433 = vperm.xlu0 %432, %v155
    %v434 = vpop.permute.xlu0 %433
    %437 = vset.pattern.permute.xlu0 0
    %438 = vperm.xlu0 %437, %v156
    %v439 = vpop.permute.xlu0 %438
    %442 = vset.pattern.permute.xlu0 0
    %443 = vperm.xlu0 %442, %v157
    %v444 = vpop.permute.xlu0 %443
    %447 = vset.pattern.permute.xlu0 0
    %448 = vperm.xlu0 %447, %v158
    %v449 = vpop.permute.xlu0 %448
    %452 = vset.pattern.permute.xlu0 0
    %453 = vperm.xlu0 %452, %v159
    %v454 = vpop.permute.xlu0 %453
    %457 = vset.pattern.permute.xlu0 0
    %458 = vperm.xlu0 %457, %v160
    %v459 = vpop.permute.xlu0 %458
    %462 = vset.pattern.permute.xlu0 0
    %463 = vperm.xlu0 %462, %v161
    %v464 = vpop.permute.xlu0 %463
    %467 = vset.pattern.permute.xlu0 0
    %468 = vperm.xlu0 %467, %v162
    %v469 = vpop.permute.xlu0 %468
    %472 = vset.pattern.permute.xlu0 0
    %473 = vperm.xlu0 %472, %v163
    %v474 = vpop.permute.xlu0 %473
    %477 = vset.pattern.permute.xlu0 0
    %478 = vperm.xlu0 %477, %v164
    %v479 = vpop.permute.xlu0 %478
    %482 = vset.pattern.permute.xlu0 0
    %483 = vperm.xlu0 %482, %v165
    %v484 = vpop.permute.xlu0 %483
    %vm486 = vcmask 261120
    %v488 = vsel %vm486, %v22, 0
    %v491 = vsel %vm486, %v23, 0
    %v494 = vsel %vm486, %v24, 0
    %v497 = vsel %vm486, %v25, 0
    %v500 = vsel %vm486, %v26, 0
    %v503 = vsel %vm486, %v27, 0
    %v506 = vsel %vm486, %v28, 0
    %v509 = vsel %vm486, %v29, 0
    %v512 = vsel %vm486, %v30, 0
    %v515 = vsel %vm486, %v31, 0
    %v518 = vsel %vm486, %v32, 0
    %v521 = vsel %vm486, %v33, 0
    %v524 = vsel %vm486, %v34, 0
    %v527 = vsel %vm486, %v35, 0
    %v530 = vsel %vm486, %v36, 0
    %v533 = vsel %vm486, %v37, 0
    %v536 = vsel %vm486, %v38, 0
    %v539 = vsel %vm486, %v39, 0
    %v542 = vsel %vm486, %v40, 0
    %v545 = vsel %vm486, %v41, 0
    %v548 = vsel %vm486, %v42, 0
    %v551 = vsel %vm486, %v43, 0
    %v554 = vsel %vm486, %v44, 0
    %v557 = vsel %vm486, %v45, 0
    %v560 = vsel %vm486, %v46, 0
    %v563 = vsel %vm486, %v47, 0
    %v566 = vsel %vm486, %v48, 0
    %v569 = vsel %vm486, %v49, 0
    %v572 = vsel %vm486, %v50, 0
    %v575 = vsel %vm486, %v51, 0
    %v578 = vsel %vm486, %v52, 0
    %v581 = vsel %vm486, %v53, 0
    %v584 = vsel %vm486, %v54, 0
    %v587 = vsel %vm486, %v55, 0
    %v590 = vsel %vm486, %v56, 0
    %v593 = vsel %vm486, %v57, 0
    %v596 = vsel %vm486, %v58, 0
    %v599 = vsel %vm486, %v59, 0
    %v602 = vsel %vm486, %v60, 0
    %v605 = vsel %vm486, %v61, 0
    %v608 = vsel %vm486, %v62, 0
    %v611 = vsel %vm486, %v63, 0
    %v614 = vsel %vm486, %v64, 0
    %v617 = vsel %vm486, %v65, 0
    %v620 = vsel %vm486, %v66, 0
    %v623 = vsel %vm486, %v67, 0
    %v626 = vsel %vm486, %v68, 0
    %v629 = vsel %vm486, %v69, 0
    %v632 = vsel %vm486, %v70, 0
    %v635 = vsel %vm486, %v71, 0
    %v638 = vsel %vm486, %v72, 0
    %v641 = vsel %vm486, %v73, 0
    %v644 = vsel %vm486, %v74, 0
    %v647 = vsel %vm486, %v75, 0
    %v650 = vsel %vm486, %v76, 0
    %v653 = vsel %vm486, %v77, 0
    %v656 = vsel %vm486, %v78, 0
    %v659 = vsel %vm486, %v79, 0
    %v662 = vsel %vm486, %v80, 0
    %v665 = vsel %vm486, %v81, 0
    %v668 = vsel %vm486, %v82, 0
    %v671 = vsel %vm486, %v83, 0
    %v674 = vsel %vm486, %v84, 0
    %v677 = vsel %vm486, %v85, 0
    %v680 = vsel %vm486, %v86, 0
    %v683 = vsel %vm486, %v87, 0
    %v686 = vsel %vm486, %v88, 0
    %v689 = vsel %vm486, %v89, 0
    %v692 = vsel %vm486, %v90, 0
    %v695 = vsel %vm486, %v91, 0
    %v698 = vsel %vm486, %v92, 0
    %v701 = vsel %vm486, %v93, 0
    %v704 = vsel %vm486, %v94, 0
    %v707 = vsel %vm486, %v95, 0
    %v710 = vsel %vm486, %v96, 0
    %v713 = vsel %vm486, %v97, 0
    %v716 = vsel %vm486, %v98, 0
    %v719 = vsel %vm486, %v99, 0
    %v722 = vsel %vm486, %v100, 0
    %v725 = vsel %vm486, %v101, 0
    %727 = vmatprep.subr.mxu0 0.0
    %728 = vmatpush1.xpose.msra.mxu0 %v680
    %729 = vmatprep.subr.mxu0 0.0
    %730 = vmatpush1.xpose.msra.mxu0 %v683
    %731 = vmatprep.subr.mxu0 0.0
    %732 = vmatpush1.xpose.msra.mxu0 %v686
    %733 = vmatprep.subr.mxu0 0.0
    %734 = vmatpush1.xpose.msra.mxu0 %v689
    %735 = vmatprep.subr.mxu0 0.0
    %736 = vmatpush1.xpose.msra.mxu0 %v692
    %737 = vmatprep.subr.mxu0 0.0
    %738 = vmatpush1.xpose.msra.mxu0 %v695
    %739 = vmatprep.subr.mxu0 0.0
    %740 = vmatpush1.xpose.msra.mxu0 %v698
    %741 = vmatprep.subr.mxu0 0.0
    %742 = vmatpush1.xpose.msra.mxu0 %v701
    %743 = vmatprep.subr.mxu0 0.0
    %744 = vmatpush1.xpose.msra.mxu0 %v704
    %745 = vmatprep.subr.mxu0 0.0
    %746 = vmatpush1.xpose.msra.mxu0 %v707
    %747 = vmatprep.subr.mxu0 0.0
    %748 = vmatpush1.xpose.msra.mxu0 %v710
    %749 = vmatprep.subr.mxu0 0.0
    %750 = vmatpush1.xpose.msra.mxu0 %v713
    %751 = vmatprep.subr.mxu0 0.0
    %752 = vmatpush1.xpose.msra.mxu0 %v716
    %753 = vmatprep.subr.mxu0 0.0
    %754 = vmatpush1.xpose.msra.mxu0 %v719
    %755 = vmatprep.subr.mxu0 0.0
    %756 = vmatpush1.xpose.msra.mxu0 %v722
    %757 = vmatprep.subr.mxu0 0.0
    %758 = vmatpush1.xpose.msra.mxu0 %v725
    %759 = vmatprep.subr.mxu0 0.0
    %760 = vmatpush1.xpose.msra.mxu0 0.0
    %761 = vmatprep.subr.mxu0 0.0
    %762 = vmatpush1.xpose.msra.mxu0 0.0
    %763 = vmatprep.subr.mxu0 0.0
    %764 = vmatpush1.xpose.msra.mxu0 0.0
    %765 = vmatprep.subr.mxu0 0.0
    %766 = vmatpush1.xpose.msra.mxu0 0.0
    %767 = vmatprep.subr.mxu0 0.0
    %768 = vmatpush1.xpose.msra.mxu0 0.0
    %769 = vmatprep.subr.mxu0 0.0
    %770 = vmatpush1.xpose.msra.mxu0 0.0
    %771 = vmatprep.subr.mxu0 0.0
    %772 = vmatpush1.xpose.msra.mxu0 0.0
    %773 = vmatprep.subr.mxu0 0.0
    %774 = vmatpush1.xpose.msra.mxu0 0.0
    %775 = vmatprep.subr.mxu0 0.0
    %776 = vmatpush1.xpose.msra.mxu0 0.0
    %777 = vmatprep.subr.mxu0 0.0
    %778 = vmatpush1.xpose.msra.mxu0 0.0
    %779 = vmatprep.subr.mxu0 0.0
    %780 = vmatpush1.xpose.msra.mxu0 0.0
    %781 = vmatprep.subr.mxu0 0.0
    %782 = vmatpush1.xpose.msra.mxu0 0.0
    %783 = vmatprep.subr.mxu0 0.0
    %784 = vmatpush1.xpose.msra.mxu0 0.0
    %785 = vmatprep.subr.mxu0 0.0
    %786 = vmatpush1.xpose.msra.mxu0 0.0
    %787 = vmatprep.subr.mxu0 0.0
    %788 = vmatpush1.xpose.msra.mxu0 0.0
    %789 = vmatprep.subr.mxu0 0.0
    %790 = vmatpush1.xpose.msra.mxu0 0.0
    %791 = vmatprep.mubr.f32.mxu0 0.0
    %792 = vmatmul.mubr.f32.gmra.mrb[0].mxu0 %v488
    %v793 = vpop.f32.mrb[0].mxu0
    %v794 = vadd.f32 %v169, %v793
    %v795 = vpop.f32.mrb[0].mxu0
    %796 = vmatprep.mubr.f32.mxu0 0.0
    %797 = vmatmul.mubr.f32.gmra.mrb[0].mxu0 %v491
    %v798 = vpop.f32.mrb[0].mxu0
    %v799 = vadd.f32 %v174, %v798
    %v800 = vpop.f32.mrb[0].mxu0
    %801 = vmatprep.mubr.f32.mxu0 0.0
    %802 = vmatmul.mubr.f32.gmra.mrb[0].mxu0 %v494
    %v803 = vpop.f32.mrb[0].mxu0
    %v804 = vadd.f32 %v179, %v803
    %v805 = vpop.f32.mrb[0].mxu0
    %806 = vmatprep.mubr.f32.mxu0 0.0
    %807 = vmatmul.mubr.f32.gmra.mrb[0].mxu0 %v497
    %v808 = vpop.f32.mrb[0].mxu0
    %v809 = vadd.f32 %v184, %v808
    %v810 = vpop.f32.mrb[0].mxu0
    %811 = vmatprep.mubr.f32.mxu0 0.0
    %812 = vmatmul.mubr.f32.gmra.mrb[0].mxu0 %v500
    %v813 = vpop.f32.mrb[0].mxu0
    %v814 = vadd.f32 %v189, %v813
    %v815 = vpop.f32.mrb[0].mxu0
    %816 = vmatprep.mubr.f32.mxu0 0.0
    %817 = vmatmul.mubr.f32.gmra.mrb[0].mxu0 %v503
    %v818 = vpop.f32.mrb[0].mxu0
    %v819 = vadd.f32 %v194, %v818
    %v820 = vpop.f32.mrb[0].mxu0
    %821 = vmatprep.mubr.f32.mxu0 0.0
    %822 = vmatmul.mubr.f32.gmra.mrb[0].mxu0 %v506
    %v823 = vpop.f32.mrb[0].mxu0
    %v824 = vadd.f32 %v199, %v823
    %v825 = vpop.f32.mrb[0].mxu0
    %826 = vmatprep.mubr.f32.mxu0 0.0
    %827 = vmatmul.mubr.f32.gmra.mrb[0].mxu0 %v509
    %v828 = vpop.f32.mrb[0].mxu0
    %v829 = vadd.f32 %v204, %v828
    %v830 = vpop.f32.mrb[0].mxu0
    %831 = vmatprep.mubr.f32.mxu0 0.0
    %832 = vmatmul.mubr.f32.gmra.mrb[0].mxu0 %v512
    %v833 = vpop.f32.mrb[0].mxu0
    %v834 = vadd.f32 %v209, %v833
    %v835 = vpop.f32.mrb[0].mxu0
    %836 = vmatprep.mubr.f32.mxu0 0.0
    %837 = vmatmul.mubr.f32.gmra.mrb[0].mxu0 %v515
    %v838 = vpop.f32.mrb[0].mxu0
    %v839 = vadd.f32 %v214, %v838
    %v840 = vpop.f32.mrb[0].mxu0
    %841 = vmatprep.mubr.f32.mxu0 0.0
    %842 = vmatmul.mubr.f32.gmra.mrb[0].mxu0 %v518
    %v843 = vpop.f32.mrb[0].mxu0
    %v844 = vadd.f32 %v219, %v843
    %v845 = vpop.f32.mrb[0].mxu0
    %846 = vmatprep.mubr.f32.mxu0 0.0
    %847 = vmatmul.mubr.f32.gmra.mrb[0].mxu0 %v521
    %v848 = vpop.f32.mrb[0].mxu0
    %v849 = vadd.f32 %v224, %v848
    %v850 = vpop.f32.mrb[0].mxu0
    %851 = vmatprep.mubr.f32.mxu0 0.0
    %852 = vmatmul.mubr.f32.gmra.mrb[0].mxu0 %v524
    %v853 = vpop.f32.mrb[0].mxu0
    %v854 = vadd.f32 %v229, %v853
    %v855 = vpop.f32.mrb[0].mxu0
    %856 = vmatprep.mubr.f32.mxu0 0.0
    %857 = vmatmul.mubr.f32.gmra.mrb[0].mxu0 %v527
    %v858 = vpop.f32.mrb[0].mxu0
    %v859 = vadd.f32 %v234, %v858
    %v860 = vpop.f32.mrb[0].mxu0
    %861 = vmatprep.mubr.f32.mxu0 0.0
    %862 = vmatmul.mubr.f32.gmra.mrb[0].mxu0 %v530
    %v863 = vpop.f32.mrb[0].mxu0
    %v864 = vadd.f32 %v239, %v863
    %v865 = vpop.f32.mrb[0].mxu0
    %866 = vmatprep.mubr.f32.mxu0 0.0
    %867 = vmatmul.mubr.f32.gmra.mrb[0].mxu0 %v533
    %v868 = vpop.f32.mrb[0].mxu0
    %v869 = vadd.f32 %v244, %v868
    %v870 = vpop.f32.mrb[0].mxu0
    %871 = vmatprep.mubr.f32.mxu0 0.0
    %872 = vmatmul.mubr.f32.gmra.mrb[0].mxu0 %v536
    %v873 = vpop.f32.mrb[0].mxu0
    %v874 = vadd.f32 %v249, %v873
    %v875 = vpop.f32.mrb[0].mxu0
    %876 = vmatprep.mubr.f32.mxu0 0.0
    %877 = vmatmul.mubr.f32.gmra.mrb[0].mxu0 %v539
    %v878 = vpop.f32.mrb[0].mxu0
    %v879 = vadd.f32 %v254, %v878
    %v880 = vpop.f32.mrb[0].mxu0
    %881 = vmatprep.mubr.f32.mxu0 0.0
    %882 = vmatmul.mubr.f32.gmra.mrb[0].mxu0 %v542
    %v883 = vpop.f32.mrb[0].mxu0
    %v884 = vadd.f32 %v259, %v883
    %v885 = vpop.f32.mrb[0].mxu0
    %886 = vmatprep.mubr.f32.mxu0 0.0
    %887 = vmatmul.mubr.f32.gmra.mrb[0].mxu0 %v545
    %v888 = vpop.f32.mrb[0].mxu0
    %v889 = vadd.f32 %v264, %v888
    %v890 = vpop.f32.mrb[0].mxu0
    %891 = vmatprep.mubr.f32.mxu0 0.0
    %892 = vmatmul.mubr.f32.gmra.mrb[0].mxu0 %v548
    %v893 = vpop.f32.mrb[0].mxu0
    %v894 = vadd.f32 %v269, %v893
    %v895 = vpop.f32.mrb[0].mxu0
    %896 = vmatprep.mubr.f32.mxu0 0.0
    %897 = vmatmul.mubr.f32.gmra.mrb[0].mxu0 %v551
    %v898 = vpop.f32.mrb[0].mxu0
    %v899 = vadd.f32 %v274, %v898
    %v900 = vpop.f32.mrb[0].mxu0
    %901 = vmatprep.mubr.f32.mxu0 0.0
    %902 = vmatmul.mubr.f32.gmra.mrb[0].mxu0 %v554
    %v903 = vpop.f32.mrb[0].mxu0
    %v904 = vadd.f32 %v279, %v903
    %v905 = vpop.f32.mrb[0].mxu0
    %906 = vmatprep.mubr.f32.mxu0 0.0
    %907 = vmatmul.mubr.f32.gmra.mrb[0].mxu0 %v557
    %v908 = vpop.f32.mrb[0].mxu0
    %v909 = vadd.f32 %v284, %v908
    %v910 = vpop.f32.mrb[0].mxu0
    %911 = vmatprep.mubr.f32.mxu0 0.0
    %912 = vmatmul.mubr.f32.gmra.mrb[0].mxu0 %v560
    %v913 = vpop.f32.mrb[0].mxu0
    %v914 = vadd.f32 %v289, %v913
    %v915 = vpop.f32.mrb[0].mxu0
    %916 = vmatprep.mubr.f32.mxu0 0.0
    %917 = vmatmul.mubr.f32.gmra.mrb[0].mxu0 %v563
    %v918 = vpop.f32.mrb[0].mxu0
    %v919 = vadd.f32 %v294, %v918
    %v920 = vpop.f32.mrb[0].mxu0
    %921 = vmatprep.mubr.f32.mxu0 0.0
    %922 = vmatmul.mubr.f32.gmra.mrb[0].mxu0 %v566
    %v923 = vpop.f32.mrb[0].mxu0
    %v924 = vadd.f32 %v299, %v923
    %v925 = vpop.f32.mrb[0].mxu0
    %926 = vmatprep.mubr.f32.mxu0 0.0
    %927 = vmatmul.mubr.f32.gmra.mrb[0].mxu0 %v569
    %v928 = vpop.f32.mrb[0].mxu0
    %v929 = vadd.f32 %v304, %v928
    %v930 = vpop.f32.mrb[0].mxu0
    %931 = vmatprep.mubr.f32.mxu0 0.0
    %932 = vmatmul.mubr.f32.gmra.mrb[0].mxu0 %v572
    %v933 = vpop.f32.mrb[0].mxu0
    %v934 = vadd.f32 %v309, %v933
    %v935 = vpop.f32.mrb[0].mxu0
    %936 = vmatprep.mubr.f32.mxu0 0.0
    %937 = vmatmul.mubr.f32.gmra.mrb[0].mxu0 %v575
    %v938 = vpop.f32.mrb[0].mxu0
    %v939 = vadd.f32 %v314, %v938
    %v940 = vpop.f32.mrb[0].mxu0
    %941 = vmatprep.mubr.f32.mxu0 0.0
    %942 = vmatmul.mubr.f32.gmra.mrb[0].mxu0 %v578
    %v943 = vpop.f32.mrb[0].mxu0
    %v944 = vadd.f32 %v319, %v943
    %v945 = vpop.f32.mrb[0].mxu0
    %946 = vmatprep.mubr.f32.mxu0 0.0
    %947 = vmatmul.mubr.f32.gmra.mrb[0].mxu0 %v581
    %v948 = vpop.f32.mrb[0].mxu0
    %v949 = vadd.f32 %v324, %v948
    %v950 = vpop.f32.mrb[0].mxu0
    %951 = vmatprep.mubr.f32.mxu0 0.0
    %952 = vmatmul.mubr.f32.gmra.mrb[0].mxu0 %v584
    %v953 = vpop.f32.mrb[0].mxu0
    %v954 = vadd.f32 %v329, %v953
    %v955 = vpop.f32.mrb[0].mxu0
    %956 = vmatprep.mubr.f32.mxu0 0.0
    %957 = vmatmul.mubr.f32.gmra.mrb[0].mxu0 %v587
    %v958 = vpop.f32.mrb[0].mxu0
    %v959 = vadd.f32 %v334, %v958
    %v960 = vpop.f32.mrb[0].mxu0
    %961 = vmatprep.mubr.f32.mxu0 0.0
    %962 = vmatmul.mubr.f32.gmra.mrb[0].mxu0 %v590
    %v963 = vpop.f32.mrb[0].mxu0
    %v964 = vadd.f32 %v339, %v963
    %v965 = vpop.f32.mrb[0].mxu0
    %966 = vmatprep.mubr.f32.mxu0 0.0
    %967 = vmatmul.mubr.f32.gmra.mrb[0].mxu0 %v593
    %v968 = vpop.f32.mrb[0].mxu0
    %v969 = vadd.f32 %v344, %v968
    %v970 = vpop.f32.mrb[0].mxu0
    %971 = vmatprep.mubr.f32.mxu0 0.0
    %972 = vmatmul.mubr.f32.gmra.mrb[0].mxu0 %v596
    %v973 = vpop.f32.mrb[0].mxu0
    %v974 = vadd.f32 %v349, %v973
    %v975 = vpop.f32.mrb[0].mxu0
    %976 = vmatprep.mubr.f32.mxu0 0.0
    %977 = vmatmul.mubr.f32.gmra.mrb[0].mxu0 %v599
    %v978 = vpop.f32.mrb[0].mxu0
    %v979 = vadd.f32 %v354, %v978
    %v980 = vpop.f32.mrb[0].mxu0
    %981 = vmatprep.mubr.f32.mxu0 0.0
    %982 = vmatmul.mubr.f32.gmra.mrb[0].mxu0 %v602
    %v983 = vpop.f32.mrb[0].mxu0
    %v984 = vadd.f32 %v359, %v983
    %v985 = vpop.f32.mrb[0].mxu0
    %986 = vmatprep.mubr.f32.mxu0 0.0
    %987 = vmatmul.mubr.f32.gmra.mrb[0].mxu0 %v605
    %v988 = vpop.f32.mrb[0].mxu0
    %v989 = vadd.f32 %v364, %v988
    %v990 = vpop.f32.mrb[0].mxu0
    %991 = vmatprep.mubr.f32.mxu0 0.0
    %992 = vmatmul.mubr.f32.gmra.mrb[0].mxu0 %v608
    %v993 = vpop.f32.mrb[0].mxu0
    %v994 = vadd.f32 %v369, %v993
    %v995 = vpop.f32.mrb[0].mxu0
    %996 = vmatprep.mubr.f32.mxu0 0.0
    %997 = vmatmul.mubr.f32.gmra.mrb[0].mxu0 %v611
    %v998 = vpop.f32.mrb[0].mxu0
    %v999 = vadd.f32 %v374, %v998
    %v1000 = vpop.f32.mrb[0].mxu0
    %1001 = vmatprep.mubr.f32.mxu0 0.0
    %1002 = vmatmul.mubr.f32.gmra.mrb[0].mxu0 %v614
    %v1003 = vpop.f32.mrb[0].mxu0
    %v1004 = vadd.f32 %v379, %v1003
    %v1005 = vpop.f32.mrb[0].mxu0
    %1006 = vmatprep.mubr.f32.mxu0 0.0
    %1007 = vmatmul.mubr.f32.gmra.mrb[0].mxu0 %v617
    %v1008 = vpop.f32.mrb[0].mxu0
    %v1009 = vadd.f32 %v384, %v1008
    %v1010 = vpop.f32.mrb[0].mxu0
    %1011 = vmatprep.mubr.f32.mxu0 0.0
    %1012 = vmatmul.mubr.f32.gmra.mrb[0].mxu0 %v620
    %v1013 = vpop.f32.mrb[0].mxu0
    %v1014 = vadd.f32 %v389, %v1013
    %v1015 = vpop.f32.mrb[0].mxu0
    %1016 = vmatprep.mubr.f32.mxu0 0.0
    %1017 = vmatmul.mubr.f32.gmra.mrb[0].mxu0 %v623
    %v1018 = vpop.f32.mrb[0].mxu0
    %v1019 = vadd.f32 %v394, %v1018
    %v1020 = vpop.f32.mrb[0].mxu0
    %1021 = vmatprep.mubr.f32.mxu0 0.0
    %1022 = vmatmul.mubr.f32.gmra.mrb[0].mxu0 %v626
    %v1023 = vpop.f32.mrb[0].mxu0
    %v1024 = vadd.f32 %v399, %v1023
    %v1025 = vpop.f32.mrb[0].mxu0
    %1026 = vmatprep.mubr.f32.mxu0 0.0
    %1027 = vmatmul.mubr.f32.gmra.mrb[0].mxu0 %v629
    %v1028 = vpop.f32.mrb[0].mxu0
    %v1029 = vadd.f32 %v404, %v1028
    %v1030 = vpop.f32.mrb[0].mxu0
    %1031 = vmatprep.mubr.f32.mxu0 0.0
    %1032 = vmatmul.mubr.f32.gmra.mrb[0].mxu0 %v632
    %v1033 = vpop.f32.mrb[0].mxu0
    %v1034 = vadd.f32 %v409, %v1033
    %v1035 = vpop.f32.mrb[0].mxu0
    %1036 = vmatprep.mubr.f32.mxu0 0.0
    %1037 = vmatmul.mubr.f32.gmra.mrb[0].mxu0 %v635
    %v1038 = vpop.f32.mrb[0].mxu0
    %v1039 = vadd.f32 %v414, %v1038
    %v1040 = vpop.f32.mrb[0].mxu0
    %1041 = vmatprep.mubr.f32.mxu0 0.0
    %1042 = vmatmul.mubr.f32.gmra.mrb[0].mxu0 %v638
    %v1043 = vpop.f32.mrb[0].mxu0
    %v1044 = vadd.f32 %v419, %v1043
    %v1045 = vpop.f32.mrb[0].mxu0
    %1046 = vmatprep.mubr.f32.mxu0 0.0
    %1047 = vmatmul.mubr.f32.gmra.mrb[0].mxu0 %v641
    %v1048 = vpop.f32.mrb[0].mxu0
    %v1049 = vadd.f32 %v424, %v1048
    %v1050 = vpop.f32.mrb[0].mxu0
    %1051 = vmatprep.mubr.f32.mxu0 0.0
    %1052 = vmatmul.mubr.f32.gmra.mrb[0].mxu0 %v644
    %v1053 = vpop.f32.mrb[0].mxu0
    %v1054 = vadd.f32 %v429, %v1053
    %v1055 = vpop.f32.mrb[0].mxu0
    %1056 = vmatprep.mubr.f32.mxu0 0.0
    %1057 = vmatmul.mubr.f32.gmra.mrb[0].mxu0 %v647
    %v1058 = vpop.f32.mrb[0].mxu0
    %v1059 = vadd.f32 %v434, %v1058
    %v1060 = vpop.f32.mrb[0].mxu0
    %1061 = vmatprep.mubr.f32.mxu0 0.0
    %1062 = vmatmul.mubr.f32.gmra.mrb[0].mxu0 %v650
    %v1063 = vpop.f32.mrb[0].mxu0
    %v1064 = vadd.f32 %v439, %v1063
    %v1065 = vpop.f32.mrb[0].mxu0
    %1066 = vmatprep.mubr.f32.mxu0 0.0
    %1067 = vmatmul.mubr.f32.gmra.mrb[0].mxu0 %v653
    %v1068 = vpop.f32.mrb[0].mxu0
    %v1069 = vadd.f32 %v444, %v1068
    %v1070 = vpop.f32.mrb[0].mxu0
    %1071 = vmatprep.mubr.f32.mxu0 0.0
    %1072 = vmatmul.mubr.f32.gmra.mrb[0].mxu0 %v656
    %v1073 = vpop.f32.mrb[0].mxu0
    %v1074 = vadd.f32 %v449, %v1073
    %v1075 = vpop.f32.mrb[0].mxu0
    %1076 = vmatprep.mubr.f32.mxu0 0.0
    %1077 = vmatmul.mubr.f32.gmra.mrb[0].mxu0 %v659
    %v1078 = vpop.f32.mrb[0].mxu0
    %v1079 = vadd.f32 %v454, %v1078
    %v1080 = vpop.f32.mrb[0].mxu0
    %1081 = vmatprep.mubr.f32.mxu0 0.0
    %1082 = vmatmul.mubr.f32.gmra.mrb[0].mxu0 %v662
    %v1083 = vpop.f32.mrb[0].mxu0
    %v1084 = vadd.f32 %v459, %v1083
    %v1085 = vpop.f32.mrb[0].mxu0
    %1086 = vmatprep.mubr.f32.mxu0 0.0
    %1087 = vmatmul.mubr.f32.gmra.mrb[0].mxu0 %v665
    %v1088 = vpop.f32.mrb[0].mxu0
    %v1089 = vadd.f32 %v464, %v1088
    %v1090 = vpop.f32.mrb[0].mxu0
    %1091 = vmatprep.mubr.f32.mxu0 0.0
    %1092 = vmatmul.mubr.f32.gmra.mrb[0].mxu0 %v668
    %v1093 = vpop.f32.mrb[0].mxu0
    %v1094 = vadd.f32 %v469, %v1093
    %v1095 = vpop.f32.mrb[0].mxu0
    %1096 = vmatprep.mubr.f32.mxu0 0.0
    %1097 = vmatmul.mubr.f32.gmra.mrb[0].mxu0 %v671
    %v1098 = vpop.f32.mrb[0].mxu0
    %v1099 = vadd.f32 %v474, %v1098
    %v1100 = vpop.f32.mrb[0].mxu0
    %1101 = vmatprep.mubr.f32.mxu0 0.0
    %1102 = vmatmul.mubr.f32.gmra.mrb[0].mxu0 %v674
    %v1103 = vpop.f32.mrb[0].mxu0
    %v1104 = vadd.f32 %v479, %v1103
    %v1105 = vpop.f32.mrb[0].mxu0
    %1106 = vmatprep.mubr.f32.mxu0 0.0
    %1107 = vmatmul.mubr.f32.gmra.mrb[0].mxu0 %v677
    %v1108 = vpop.f32.mrb[0].mxu0
    %v1109 = vadd.f32 %v484, %v1108
    %v1110 = vpop.f32.mrb[0].mxu0
    %1111 = vdwg.mxu0
    %v1112 = vtanh.pop %v794
    %v1113 = vtanh.pop %v799
    %v1114 = vtanh.pop %v804
    %v1115 = vtanh.pop %v809
    %v1116 = vtanh.pop %v814
    %v1117 = vtanh.pop %v819
    %v1118 = vtanh.pop %v824
    %v1119 = vtanh.pop %v829
    %v1120 = vtanh.pop %v834
    %v1121 = vtanh.pop %v839
    %v1122 = vtanh.pop %v844
    %v1123 = vtanh.pop %v849
    %v1124 = vtanh.pop %v854
    %v1125 = vtanh.pop %v859
    %v1126 = vtanh.pop %v864
    %v1127 = vtanh.pop %v869
    %v1128 = vtanh.pop %v874
    %v1129 = vtanh.pop %v879
    %v1130 = vtanh.pop %v884
    %v1131 = vtanh.pop %v889
    %v1132 = vtanh.pop %v894
    %v1133 = vtanh.pop %v899
    %v1134 = vtanh.pop %v904
    %v1135 = vtanh.pop %v909
    %v1136 = vtanh.pop %v914
    %v1137 = vtanh.pop %v919
    %v1138 = vtanh.pop %v924
    %v1139 = vtanh.pop %v929
    %v1140 = vtanh.pop %v934
    %v1141 = vtanh.pop %v939
    %v1142 = vtanh.pop %v944
    %v1143 = vtanh.pop %v949
    %v1144 = vtanh.pop %v954
    %v1145 = vtanh.pop %v959
    %v1146 = vtanh.pop %v964
    %v1147 = vtanh.pop %v969
    %v1148 = vtanh.pop %v974
    %v1149 = vtanh.pop %v979
    %v1150 = vtanh.pop %v984
    %v1151 = vtanh.pop %v989
    %v1152 = vtanh.pop %v994
    %v1153 = vtanh.pop %v999
    %v1154 = vtanh.pop %v1004
    %v1155 = vtanh.pop %v1009
    %v1156 = vtanh.pop %v1014
    %v1157 = vtanh.pop %v1019
    %v1158 = vtanh.pop %v1024
    %v1159 = vtanh.pop %v1029
    %v1160 = vtanh.pop %v1034
    %v1161 = vtanh.pop %v1039
    %v1162 = vtanh.pop %v1044
    %v1163 = vtanh.pop %v1049
    %v1164 = vtanh.pop %v1054
    %v1165 = vtanh.pop %v1059
    %v1166 = vtanh.pop %v1064
    %v1167 = vtanh.pop %v1069
    %v1168 = vtanh.pop %v1074
    %v1169 = vtanh.pop %v1079
    %v1170 = vtanh.pop %v1084
    %v1171 = vtanh.pop %v1089
    %v1172 = vtanh.pop %v1094
    %v1173 = vtanh.pop %v1099
    %v1174 = vtanh.pop %v1104
    %v1175 = vtanh.pop %v1109
    %v1176 = vld [vmem:[%s3] sm:$0xff]
    %v1177 = vld [vmem:[%s3 + $0x8] sm:$0xff]
    %v1178 = vld [vmem:[%s3 + $0x10] sm:$0xff]
    %v1179 = vld [vmem:[%s3 + $0x18] sm:$0xff]
    %v1180 = vld [vmem:[%s3 + $0x20] sm:$0xff]
    %v1181 = vld [vmem:[%s3 + $0x28] sm:$0xff]
    %v1182 = vld [vmem:[%s3 + $0x30] sm:$0xff]
    %v1183 = vld [vmem:[%s3 + $0x38] sm:$0xff]
    %v1184 = vld [vmem:[%s3 + $0x40] sm:$0xff]
    %v1185 = vld [vmem:[%s3 + $0x48] sm:$0xff]
    %v1186 = vld [vmem:[%s3 + $0x50] sm:$0xff]
    %v1187 = vld [vmem:[%s3 + $0x58] sm:$0xff]
    %v1188 = vld [vmem:[%s3 + $0x60] sm:$0xff]
    %v1189 = vld [vmem:[%s3 + $0x68] sm:$0xff]
    %v1190 = vld [vmem:[%s3 + $0x70] sm:$0xff]
    %v1191 = vld [vmem:[%s3 + $0x78] sm:$0xff]
    %v1192 = vld [vmem:[%s3 + $0x80] sm:$0xff]
    %v1193 = vld [vmem:[%s3 + $0x88] sm:$0xff]
    %v1194 = vld [vmem:[%s3 + $0x90] sm:$0xff]
    %v1195 = vld [vmem:[%s3 + $0x98] sm:$0xff]
    %v1196 = vld [vmem:[%s3 + $0xa0] sm:$0xff]
    %v1197 = vld [vmem:[%s3 + $0xa8] sm:$0xff]
    %v1198 = vld [vmem:[%s3 + $0xb0] sm:$0xff]
    %v1199 = vld [vmem:[%s3 + $0xb8] sm:$0xff]
    %v1200 = vld [vmem:[%s3 + $0xc0] sm:$0xff]
    %v1201 = vld [vmem:[%s3 + $0xc8] sm:$0xff]
    %v1202 = vld [vmem:[%s3 + $0xd0] sm:$0xff]
    %v1203 = vld [vmem:[%s3 + $0xd8] sm:$0xff]
    %v1204 = vld [vmem:[%s3 + $0xe0] sm:$0xff]
    %v1205 = vld [vmem:[%s3 + $0xe8] sm:$0xff]
    %v1206 = vld [vmem:[%s3 + $0xf0] sm:$0xff]
    %v1207 = vld [vmem:[%s3 + $0xf8] sm:$0xff]
    %v1208 = vld [vmem:[%s3 + $0x100] sm:$0xff]
    %v1209 = vld [vmem:[%s3 + $0x108] sm:$0xff]
    %v1210 = vld [vmem:[%s3 + $0x110] sm:$0xff]
    %v1211 = vld [vmem:[%s3 + $0x118] sm:$0xff]
    %v1212 = vld [vmem:[%s3 + $0x120] sm:$0xff]
    %v1213 = vld [vmem:[%s3 + $0x128] sm:$0xff]
    %v1214 = vld [vmem:[%s3 + $0x130] sm:$0xff]
    %v1215 = vld [vmem:[%s3 + $0x138] sm:$0xff]
    %v1216 = vld [vmem:[%s3 + $0x140] sm:$0xff]
    %v1217 = vld [vmem:[%s3 + $0x148] sm:$0xff]
    %v1218 = vld [vmem:[%s3 + $0x150] sm:$0xff]
    %v1219 = vld [vmem:[%s3 + $0x158] sm:$0xff]
    %v1220 = vld [vmem:[%s3 + $0x160] sm:$0xff]
    %v1221 = vld [vmem:[%s3 + $0x168] sm:$0xff]
    %v1222 = vld [vmem:[%s3 + $0x170] sm:$0xff]
    %v1223 = vld [vmem:[%s3 + $0x178] sm:$0xff]
    %v1224 = vld [vmem:[%s3 + $0x180] sm:$0xff]
    %v1225 = vld [vmem:[%s3 + $0x188] sm:$0xff]
    %v1226 = vld [vmem:[%s3 + $0x190] sm:$0xff]
    %v1227 = vld [vmem:[%s3 + $0x198] sm:$0xff]
    %v1228 = vld [vmem:[%s3 + $0x1a0] sm:$0xff]
    %v1229 = vld [vmem:[%s3 + $0x1a8] sm:$0xff]
    %v1230 = vld [vmem:[%s3 + $0x1b0] sm:$0xff]
    %v1231 = vld [vmem:[%s3 + $0x1b8] sm:$0xff]
    %v1232 = vld [vmem:[%s3 + $0x1c0] sm:$0xff]
    %v1233 = vld [vmem:[%s3 + $0x1c8] sm:$0xff]
    %v1234 = vld [vmem:[%s3 + $0x1d0] sm:$0xff]
    %v1235 = vld [vmem:[%s3 + $0x1d8] sm:$0xff]
    %v1236 = vld [vmem:[%s3 + $0x1e0] sm:$0xff]
    %v1237 = vld [vmem:[%s3 + $0x1e8] sm:$0xff]
    %v1238 = vld [vmem:[%s3 + $0x1f0] sm:$0xff]
    %v1239 = vld [vmem:[%s3 + $0x1f8] sm:$0xff]
    %1241 = vset.pattern.permute.xlu0 0
    %1242 = vperm.xlu0 %1241, %v1176
    %v1243 = vpop.permute.xlu0 %1242
    %1246 = vset.pattern.permute.xlu0 0
    %1247 = vperm.xlu0 %1246, %v1177
    %v1248 = vpop.permute.xlu0 %1247
    %1251 = vset.pattern.permute.xlu0 0
    %1252 = vperm.xlu0 %1251, %v1178
    %v1253 = vpop.permute.xlu0 %1252
    %1256 = vset.pattern.permute.xlu0 0
    %1257 = vperm.xlu0 %1256, %v1179
    %v1258 = vpop.permute.xlu0 %1257
    %1261 = vset.pattern.permute.xlu0 0
    %1262 = vperm.xlu0 %1261, %v1180
    %v1263 = vpop.permute.xlu0 %1262
    %1266 = vset.pattern.permute.xlu0 0
    %1267 = vperm.xlu0 %1266, %v1181
    %v1268 = vpop.permute.xlu0 %1267
    %1271 = vset.pattern.permute.xlu0 0
    %1272 = vperm.xlu0 %1271, %v1182
    %v1273 = vpop.permute.xlu0 %1272
    %1276 = vset.pattern.permute.xlu0 0
    %1277 = vperm.xlu0 %1276, %v1183
    %v1278 = vpop.permute.xlu0 %1277
    %1281 = vset.pattern.permute.xlu0 0
    %1282 = vperm.xlu0 %1281, %v1184
    %v1283 = vpop.permute.xlu0 %1282
    %1286 = vset.pattern.permute.xlu0 0
    %1287 = vperm.xlu0 %1286, %v1185
    %v1288 = vpop.permute.xlu0 %1287
    %1291 = vset.pattern.permute.xlu0 0
    %1292 = vperm.xlu0 %1291, %v1186
    %v1293 = vpop.permute.xlu0 %1292
    %1296 = vset.pattern.permute.xlu0 0
    %1297 = vperm.xlu0 %1296, %v1187
    %v1298 = vpop.permute.xlu0 %1297
    %1301 = vset.pattern.permute.xlu0 0
    %1302 = vperm.xlu0 %1301, %v1188
    %v1303 = vpop.permute.xlu0 %1302
    %1306 = vset.pattern.permute.xlu0 0
    %1307 = vperm.xlu0 %1306, %v1189
    %v1308 = vpop.permute.xlu0 %1307
    %1311 = vset.pattern.permute.xlu0 0
    %1312 = vperm.xlu0 %1311, %v1190
    %v1313 = vpop.permute.xlu0 %1312
    %1316 = vset.pattern.permute.xlu0 0
    %1317 = vperm.xlu0 %1316, %v1191
    %v1318 = vpop.permute.xlu0 %1317
    %1321 = vset.pattern.permute.xlu0 0
    %1322 = vperm.xlu0 %1321, %v1192
    %v1323 = vpop.permute.xlu0 %1322
    %1326 = vset.pattern.permute.xlu0 0
    %1327 = vperm.xlu0 %1326, %v1193
    %v1328 = vpop.permute.xlu0 %1327
    %1331 = vset.pattern.permute.xlu0 0
    %1332 = vperm.xlu0 %1331, %v1194
    %v1333 = vpop.permute.xlu0 %1332
    %1336 = vset.pattern.permute.xlu0 0
    %1337 = vperm.xlu0 %1336, %v1195
    %v1338 = vpop.permute.xlu0 %1337
    %1341 = vset.pattern.permute.xlu0 0
    %1342 = vperm.xlu0 %1341, %v1196
    %v1343 = vpop.permute.xlu0 %1342
    %1346 = vset.pattern.permute.xlu0 0
    %1347 = vperm.xlu0 %1346, %v1197
    %v1348 = vpop.permute.xlu0 %1347
    %1351 = vset.pattern.permute.xlu0 0
    %1352 = vperm.xlu0 %1351, %v1198
    %v1353 = vpop.permute.xlu0 %1352
    %1356 = vset.pattern.permute.xlu0 0
    %1357 = vperm.xlu0 %1356, %v1199
    %v1358 = vpop.permute.xlu0 %1357
    %1361 = vset.pattern.permute.xlu0 0
    %1362 = vperm.xlu0 %1361, %v1200
    %v1363 = vpop.permute.xlu0 %1362
    %1366 = vset.pattern.permute.xlu0 0
    %1367 = vperm.xlu0 %1366, %v1201
    %v1368 = vpop.permute.xlu0 %1367
    %1371 = vset.pattern.permute.xlu0 0
    %1372 = vperm.xlu0 %1371, %v1202
    %v1373 = vpop.permute.xlu0 %1372
    %1376 = vset.pattern.permute.xlu0 0
    %1377 = vperm.xlu0 %1376, %v1203
    %v1378 = vpop.permute.xlu0 %1377
    %1381 = vset.pattern.permute.xlu0 0
    %1382 = vperm.xlu0 %1381, %v1204
    %v1383 = vpop.permute.xlu0 %1382
    %1386 = vset.pattern.permute.xlu0 0
    %1387 = vperm.xlu0 %1386, %v1205
    %v1388 = vpop.permute.xlu0 %1387
    %1391 = vset.pattern.permute.xlu0 0
    %1392 = vperm.xlu0 %1391, %v1206
    %v1393 = vpop.permute.xlu0 %1392
    %1396 = vset.pattern.permute.xlu0 0
    %1397 = vperm.xlu0 %1396, %v1207
    %v1398 = vpop.permute.xlu0 %1397
    %1401 = vset.pattern.permute.xlu0 0
    %1402 = vperm.xlu0 %1401, %v1208
    %v1403 = vpop.permute.xlu0 %1402
    %1406 = vset.pattern.permute.xlu0 0
    %1407 = vperm.xlu0 %1406, %v1209
    %v1408 = vpop.permute.xlu0 %1407
    %1411 = vset.pattern.permute.xlu0 0
    %1412 = vperm.xlu0 %1411, %v1210
    %v1413 = vpop.permute.xlu0 %1412
    %1416 = vset.pattern.permute.xlu0 0
    %1417 = vperm.xlu0 %1416, %v1211
    %v1418 = vpop.permute.xlu0 %1417
    %1421 = vset.pattern.permute.xlu0 0
    %1422 = vperm.xlu0 %1421, %v1212
    %v1423 = vpop.permute.xlu0 %1422
    %1426 = vset.pattern.permute.xlu0 0
    %1427 = vperm.xlu0 %1426, %v1213
    %v1428 = vpop.permute.xlu0 %1427
    %1431 = vset.pattern.permute.xlu0 0
    %1432 = vperm.xlu0 %1431, %v1214
    %v1433 = vpop.permute.xlu0 %1432
    %1436 = vset.pattern.permute.xlu0 0
    %1437 = vperm.xlu0 %1436, %v1215
    %v1438 = vpop.permute.xlu0 %1437
    %1441 = vset.pattern.permute.xlu0 0
    %1442 = vperm.xlu0 %1441, %v1216
    %v1443 = vpop.permute.xlu0 %1442
    %1446 = vset.pattern.permute.xlu0 0
    %1447 = vperm.xlu0 %1446, %v1217
    %v1448 = vpop.permute.xlu0 %1447
    %1451 = vset.pattern.permute.xlu0 0
    %1452 = vperm.xlu0 %1451, %v1218
    %v1453 = vpop.permute.xlu0 %1452
    %1456 = vset.pattern.permute.xlu0 0
    %1457 = vperm.xlu0 %1456, %v1219
    %v1458 = vpop.permute.xlu0 %1457
    %1461 = vset.pattern.permute.xlu0 0
    %1462 = vperm.xlu0 %1461, %v1220
    %v1463 = vpop.permute.xlu0 %1462
    %1466 = vset.pattern.permute.xlu0 0
    %1467 = vperm.xlu0 %1466, %v1221
    %v1468 = vpop.permute.xlu0 %1467
    %1471 = vset.pattern.permute.xlu0 0
    %1472 = vperm.xlu0 %1471, %v1222
    %v1473 = vpop.permute.xlu0 %1472
    %1476 = vset.pattern.permute.xlu0 0
    %1477 = vperm.xlu0 %1476, %v1223
    %v1478 = vpop.permute.xlu0 %1477
    %1481 = vset.pattern.permute.xlu0 0
    %1482 = vperm.xlu0 %1481, %v1224
    %v1483 = vpop.permute.xlu0 %1482
    %1486 = vset.pattern.permute.xlu0 0
    %1487 = vperm.xlu0 %1486, %v1225
    %v1488 = vpop.permute.xlu0 %1487
    %1491 = vset.pattern.permute.xlu0 0
    %1492 = vperm.xlu0 %1491, %v1226
    %v1493 = vpop.permute.xlu0 %1492
    %1496 = vset.pattern.permute.xlu0 0
    %1497 = vperm.xlu0 %1496, %v1227
    %v1498 = vpop.permute.xlu0 %1497
    %1501 = vset.pattern.permute.xlu0 0
    %1502 = vperm.xlu0 %1501, %v1228
    %v1503 = vpop.permute.xlu0 %1502
    %1506 = vset.pattern.permute.xlu0 0
    %1507 = vperm.xlu0 %1506, %v1229
    %v1508 = vpop.permute.xlu0 %1507
    %1511 = vset.pattern.permute.xlu0 0
    %1512 = vperm.xlu0 %1511, %v1230
    %v1513 = vpop.permute.xlu0 %1512
    %1516 = vset.pattern.permute.xlu0 0
    %1517 = vperm.xlu0 %1516, %v1231
    %v1518 = vpop.permute.xlu0 %1517
    %1521 = vset.pattern.permute.xlu0 0
    %1522 = vperm.xlu0 %1521, %v1232
    %v1523 = vpop.permute.xlu0 %1522
    %1526 = vset.pattern.permute.xlu0 0
    %1527 = vperm.xlu0 %1526, %v1233
    %v1528 = vpop.permute.xlu0 %1527
    %1531 = vset.pattern.permute.xlu0 0
    %1532 = vperm.xlu0 %1531, %v1234
    %v1533 = vpop.permute.xlu0 %1532
    %1536 = vset.pattern.permute.xlu0 0
    %1537 = vperm.xlu0 %1536, %v1235
    %v1538 = vpop.permute.xlu0 %1537
    %1541 = vset.pattern.permute.xlu0 0
    %1542 = vperm.xlu0 %1541, %v1236
    %v1543 = vpop.permute.xlu0 %1542
    %1546 = vset.pattern.permute.xlu0 0
    %1547 = vperm.xlu0 %1546, %v1237
    %v1548 = vpop.permute.xlu0 %1547
    %1551 = vset.pattern.permute.xlu0 0
    %1552 = vperm.xlu0 %1551, %v1238
    %v1553 = vpop.permute.xlu0 %1552
    %1556 = vset.pattern.permute.xlu0 0
    %1557 = vperm.xlu0 %1556, %v1239
    %v1558 = vpop.permute.xlu0 %1557
    %v1560 = vmul.f32 %v1112, %v1243
    %v1561 = vmul.f32 %v1113, %v1248
    %v1562 = vmul.f32 %v1114, %v1253
    %v1563 = vmul.f32 %v1115, %v1258
    %v1564 = vmul.f32 %v1116, %v1263
    %v1565 = vmul.f32 %v1117, %v1268
    %v1566 = vmul.f32 %v1118, %v1273
    %v1567 = vmul.f32 %v1119, %v1278
    %v1568 = vmul.f32 %v1120, %v1283
    %v1569 = vmul.f32 %v1121, %v1288
    %v1570 = vmul.f32 %v1122, %v1293
    %v1571 = vmul.f32 %v1123, %v1298
    %v1572 = vmul.f32 %v1124, %v1303
    %v1573 = vmul.f32 %v1125, %v1308
    %v1574 = vmul.f32 %v1126, %v1313
    %v1575 = vmul.f32 %v1127, %v1318
    %v1576 = vmul.f32 %v1128, %v1323
    %v1577 = vmul.f32 %v1129, %v1328
    %v1578 = vmul.f32 %v1130, %v1333
    %v1579 = vmul.f32 %v1131, %v1338
    %v1580 = vmul.f32 %v1132, %v1343
    %v1581 = vmul.f32 %v1133, %v1348
    %v1582 = vmul.f32 %v1134, %v1353
    %v1583 = vmul.f32 %v1135, %v1358
    %v1584 = vmul.f32 %v1136, %v1363
    %v1585 = vmul.f32 %v1137, %v1368
    %v1586 = vmul.f32 %v1138, %v1373
    %v1587 = vmul.f32 %v1139, %v1378
    %v1588 = vmul.f32 %v1140, %v1383
    %v1589 = vmul.f32 %v1141, %v1388
    %v1590 = vmul.f32 %v1142, %v1393
    %v1591 = vmul.f32 %v1143, %v1398
    %v1592 = vmul.f32 %v1144, %v1403
    %v1593 = vmul.f32 %v1145, %v1408
    %v1594 = vmul.f32 %v1146, %v1413
    %v1595 = vmul.f32 %v1147, %v1418
    %v1596 = vmul.f32 %v1148, %v1423
    %v1597 = vmul.f32 %v1149, %v1428
    %v1598 = vmul.f32 %v1150, %v1433
    %v1599 = vmul.f32 %v1151, %v1438
    %v1600 = vmul.f32 %v1152, %v1443
    %v1601 = vmul.f32 %v1153, %v1448
    %v1602 = vmul.f32 %v1154, %v1453
    %v1603 = vmul.f32 %v1155, %v1458
    %v1604 = vmul.f32 %v1156, %v1463
    %v1605 = vmul.f32 %v1157, %v1468
    %v1606 = vmul.f32 %v1158, %v1473
    %v1607 = vmul.f32 %v1159, %v1478
    %v1608 = vmul.f32 %v1160, %v1483
    %v1609 = vmul.f32 %v1161, %v1488
    %v1610 = vmul.f32 %v1162, %v1493
    %v1611 = vmul.f32 %v1163, %v1498
    %v1612 = vmul.f32 %v1164, %v1503
    %v1613 = vmul.f32 %v1165, %v1508
    %v1614 = vmul.f32 %v1166, %v1513
    %v1615 = vmul.f32 %v1167, %v1518
    %v1616 = vmul.f32 %v1168, %v1523
    %v1617 = vmul.f32 %v1169, %v1528
    %v1618 = vmul.f32 %v1170, %v1533
    %v1619 = vmul.f32 %v1171, %v1538
    %v1620 = vmul.f32 %v1172, %v1543
    %v1621 = vmul.f32 %v1173, %v1548
    %v1622 = vmul.f32 %v1174, %v1553
    %v1623 = vmul.f32 %v1175, %v1558
    %v1624 = vadd.f32 %v1560, %v1561
    %v1625 = vadd.f32 %v1624, %v1562
    %v1626 = vadd.f32 %v1625, %v1563
    %v1627 = vadd.f32 %v1626, %v1564
    %v1628 = vadd.f32 %v1627, %v1565
    %v1629 = vadd.f32 %v1628, %v1566
    %v1630 = vadd.f32 %v1629, %v1567
    %v1631 = vadd.f32 %v1630, %v1568
    %v1632 = vadd.f32 %v1631, %v1569
    %v1633 = vadd.f32 %v1632, %v1570
    %v1634 = vadd.f32 %v1633, %v1571
    %v1635 = vadd.f32 %v1634, %v1572
    %v1636 = vadd.f32 %v1635, %v1573
    %v1637 = vadd.f32 %v1636, %v1574
    %v1638 = vadd.f32 %v1637, %v1575
    %v1639 = vadd.f32 %v1638, %v1576
    %v1640 = vadd.f32 %v1639, %v1577
    %v1641 = vadd.f32 %v1640, %v1578
    %v1642 = vadd.f32 %v1641, %v1579
    %v1643 = vadd.f32 %v1642, %v1580
    %v1644 = vadd.f32 %v1643, %v1581
    %v1645 = vadd.f32 %v1644, %v1582
    %v1646 = vadd.f32 %v1645, %v1583
    %v1647 = vadd.f32 %v1646, %v1584
    %v1648 = vadd.f32 %v1647, %v1585
    %v1649 = vadd.f32 %v1648, %v1586
    %v1650 = vadd.f32 %v1649, %v1587
    %v1651 = vadd.f32 %v1650, %v1588
    %v1652 = vadd.f32 %v1651, %v1589
    %v1653 = vadd.f32 %v1652, %v1590
    %v1654 = vadd.f32 %v1653, %v1591
    %v1655 = vadd.f32 %v1654, %v1592
    %v1656 = vadd.f32 %v1655, %v1593
    %v1657 = vadd.f32 %v1656, %v1594
    %v1658 = vadd.f32 %v1657, %v1595
    %v1659 = vadd.f32 %v1658, %v1596
    %v1660 = vadd.f32 %v1659, %v1597
    %v1661 = vadd.f32 %v1660, %v1598
    %v1662 = vadd.f32 %v1661, %v1599
    %v1663 = vadd.f32 %v1662, %v1600
    %v1664 = vadd.f32 %v1663, %v1601
    %v1665 = vadd.f32 %v1664, %v1602
    %v1666 = vadd.f32 %v1665, %v1603
    %v1667 = vadd.f32 %v1666, %v1604
    %v1668 = vadd.f32 %v1667, %v1605
    %v1669 = vadd.f32 %v1668, %v1606
    %v1670 = vadd.f32 %v1669, %v1607
    %v1671 = vadd.f32 %v1670, %v1608
    %v1672 = vadd.f32 %v1671, %v1609
    %v1673 = vadd.f32 %v1672, %v1610
    %v1674 = vadd.f32 %v1673, %v1611
    %v1675 = vadd.f32 %v1674, %v1612
    %v1676 = vadd.f32 %v1675, %v1613
    %v1677 = vadd.f32 %v1676, %v1614
    %v1678 = vadd.f32 %v1677, %v1615
    %v1679 = vadd.f32 %v1678, %v1616
    %v1680 = vadd.f32 %v1679, %v1617
    %v1681 = vadd.f32 %v1680, %v1618
    %v1682 = vadd.f32 %v1681, %v1619
    %v1683 = vadd.f32 %v1682, %v1620
    %v1684 = vadd.f32 %v1683, %v1621
    %v1685 = vadd.f32 %v1684, %v1622
    %v1686 = vadd.f32 %v1685, %v1623
    %v1687 = vrot.slane %v1686, 4
    %v1688 = vadd.f32 %v1686, %v1687
    %v1689 = vrot.slane %v1688, 2
    %v1690 = vadd.f32 %v1688, %v1689
    %v1691 = vrot.slane %v1690, 1
    %v1692 = vadd.f32 %v1690, %v1691
    %s1693 = sld [smem:[#allocation2]]
    %v1694 = vstv %s1693
    %v1695 = vadd.f32 %v1692, %v1694
    %1696 = vst [vmem:[#allocation3] sm:$0x1] %v1695
    // Predicated region
    $region22: #{tpu_custom_call.1} parent=1 // pred_check
      _
    $region23: #{tpu_custom_call.1} parent=1 // pred_check_branch
      %1698 = sbr.rel (0) target = $region25
    $region24: #{tpu_custom_call.1} parent=1 // pred_region
      %s1700 = ssub.s32 16, 16
      %1701 = vsyncadd [#allocation4], %s1700
      %s1703 = sshll.u32 [#allocation3], 4
      %s1704 = int_to_ptr.vmem [resolvable:$true] %s1703
      %1706 = dma.vmem_to_hbm [thread:$0]  %s1704, 16, %s5, [#allocation4]
    $region25: #{tpu_custom_call.1} parent=1 // pred_fallthru
      _
    // Predicated region
    $region26: #{tpu_custom_call.1} parent=1 // pred_check
      _
    $region27: #{tpu_custom_call.1} parent=1 // pred_check_branch
      %1708 = sbr.rel (0) target = $region29
    $region28: #{tpu_custom_call.1} parent=1 // pred_region
      %1709 = dma.done [#allocation4], 16
    $region29: #{tpu_custom_call.1} parent=1 // pred_fallthru
      _
    %1710 = vsyncpa [#allocation4], 1

</llo_original>
